<compile_context>
chip_gen: v7x
topology: tpu7x:2x2x1
jax: 0.10.0
libtpu: 0.0.40
codegen_flags: <defaults>
</compile_context>

<pallas_src>
import functools

import jax
import jax.numpy as jnp
import numpy as np
from jax import lax
from jax.experimental import pallas as pl
from jax.experimental.pallas import tpu as pltpu


def _round_up(n, m):
    return ((n + m - 1) // m) * m


def _rnn_kernel(x_ref, w_ih_t_ref, w_hh_t_ref, bias_ref, h_ref, xp_ref,
                *, t_chunk, t_real, unroll):
    # x_ref:      (Tc*Bp, D)    streamed time-chunk, time-major rows  (mxu dtype)
    # w_ih_t_ref: (D,  Hp)      pre-transposed W_ih^T, resident       (mxu dtype)
    # w_hh_t_ref: (Hp, Hp)      pre-transposed W_hh^T, resident       (mxu dtype)
    # bias_ref:   (1,  Hp)      b_ih + b_hh (f32, padded lanes zero)
    # h_ref:      (Bp, Hp)      f32 OUTPUT block, resident across the grid:
    #                           doubles as the hidden-state carry (h_T on exit)
    # xp_ref:     (Tc*Bp, Hp)   f32 scratch, projected inputs for this chunk
    tc = pl.program_id(0)
    Bp, _ = h_ref.shape

    @pl.when(tc == 0)
    def _init():
        h_ref[...] = jnp.zeros_like(h_ref)

    # ---- Hoisted input projection: one MXU matmul for the whole chunk;
    #      bias (b_ih + b_hh) broadcast once here, not per timestep. ----
    xp_ref[...] = (
        jnp.dot(x_ref[...], w_ih_t_ref[...], preferred_element_type=jnp.float32)
        + bias_ref[...])

    w_hh_t = w_hh_t_ref[...]          # pre-transposed: no in-kernel .T / XLU copy
    mxu_dtype = w_hh_t.dtype
    ragged = (t_real % t_chunk) != 0  # static: do padded timesteps exist at all?

    def step(t, h):
        row = pl.multiple_of(t * Bp, Bp)
        xp_t = xp_ref[pl.ds(row, Bp), :]                      # (Bp, Hp) f32
        h_new = jnp.tanh(
            xp_t + jnp.dot(h.astype(mxu_dtype), w_hh_t,
                           preferred_element_type=jnp.float32))
        if ragged:
            # Padded timesteps (global index >= real T) must not advance h.
            h_new = jnp.where(tc * t_chunk + t < t_real, h_new, h)
        return h_new                                          # f32 carry

    # Serial recurrence over this chunk; bounded unroll keeps LLO overlap of
    # tanh/add with the next MXU push without blowing vreg live ranges.
    h_ref[...] = lax.fori_loop(0, t_chunk, step, h_ref[...], unroll=unroll)


def simple_rnn_forward(x, w_ih, w_hh, b_ih, b_hh, w_fc, b_fc,
                       *, mxu_dtype=jnp.bfloat16, t_chunk=None,
                       vmem_budget_bytes=40 * 2**20):
    """x: (B, T, D_in) batch-first, like the PyTorch module.

    mxu_dtype: dtype fed to the matmuls (bf16 by default on all generations —
    the MXU is bf16-native); the hidden-state carry, bias adds and tanh stay
    f32 and all matmuls accumulate in f32.  Use jnp.float32 for a bit-tight
    path.  t_chunk is auto-sized from vmem_budget_bytes when not given.
    """
    B, T, D = x.shape
    H = w_hh.shape[0]
    O = w_fc.shape[0]

    Bp = _round_up(B, 8)       # sublanes
    Hp = _round_up(H, 128)     # lanes (a 129..256 H naturally lands on 256)
    Dl = _round_up(D, 128)     # only for the VMEM estimate (lane-padded layout)

    f32 = jnp.float32
    mxu_bytes = jnp.dtype(mxu_dtype).itemsize

    # ---- VMEM-budgeted time-chunk selection (v7x-safe default budget). ----
    resident = (2 * (D * Hp + Hp * Hp) * mxu_bytes   # weights (double-buffered)
                + 2 * Hp * 4                          # bias
                + 2 * Bp * Hp * 4)                    # resident output / h carry
    per_step = Bp * (2 * Dl * mxu_bytes + Hp * 4)     # x (dbl-buffered) + xp f32
    if t_chunk is None:
        t_chunk = max(1, (vmem_budget_bytes - resident) // per_step)
    t_chunk = int(min(t_chunk, T))
    n_chunks = -(-T // t_chunk)          # ceil: ragged last chunk is masked
    T_pad = n_chunks * t_chunk

    est_vmem = resident + per_step * t_chunk + (1 << 20)
    vmem_limit = int(min(60 * 2**20, max(2 * est_vmem, 32 * 2**20)))

    # ---- Host-side layout: time-major, batch padded to 8 sublanes, T padded
    #      to a chunk multiple.  D is left UNPADDED and the slab is bf16 by
    #      default, so this HBM pass is ~16x smaller than the old padded-f32
    #      materialization. ----
    x_tm = jnp.zeros((T_pad, Bp, D), mxu_dtype)
    x_tm = x_tm.at[:T, :B, :].set(jnp.transpose(x, (1, 0, 2)).astype(mxu_dtype))
    x_flat = x_tm.reshape(T_pad * Bp, D)

    # Pre-transposed, zero-padded weights (no in-kernel transposes).  Padded
    # hidden lanes have zero weight/bias so they stay exactly 0 through tanh.
    w_ih_t = jnp.zeros((D, Hp), f32).at[:, :H].set(w_ih.T).astype(mxu_dtype)
    w_hh_t = jnp.zeros((Hp, Hp), f32).at[:H, :H].set(w_hh.T).astype(mxu_dtype)
    bias = jnp.zeros((1, Hp), f32).at[0, :H].set(b_ih + b_hh)

    kernel = functools.partial(_rnn_kernel, t_chunk=t_chunk, t_real=T,
                               unroll=min(t_chunk, 8))

    grid_spec = pltpu.PrefetchScalarGridSpec(
        num_scalar_prefetch=0,
        grid=(n_chunks,),
        in_specs=[
            pl.BlockSpec((t_chunk * Bp, D), lambda t: (t, 0)),  # streamed x
            pl.BlockSpec((D, Hp), lambda t: (0, 0)),            # resident weights
            pl.BlockSpec((Hp, Hp), lambda t: (0, 0)),
            pl.BlockSpec((1, Hp), lambda t: (0, 0)),
        ],
        out_specs=pl.BlockSpec((Bp, Hp), lambda t: (0, 0)),     # h carry / h_T
        scratch_shapes=[
            pltpu.VMEM((t_chunk * Bp, Hp), jnp.float32),        # per-chunk xp
        ],
    )

    h_last_p = pl.pallas_call(
        kernel,
        out_shape=jax.ShapeDtypeStruct((Bp, Hp), jnp.float32),
        grid_spec=grid_spec,
        compiler_params=pltpu.CompilerParams(
            dimension_semantics=("arbitrary",),   # time recurrence is serial
            vmem_limit_bytes=vmem_limit,
        ),
    )(x_flat, w_ih_t, w_hh_t, bias)

    # fc head in XLA: used exactly once, so keeping it out of the kernel frees
    # VMEM (its weights no longer sit double-buffered for the whole grid).
    h_last = h_last_p[:B, :H]
    return h_last @ w_fc.astype(f32).T + b_fc.astype(f32)


def _reference(x, w_ih, w_hh, b_ih, b_hh, w_fc, b_fc):
    B, T, D = x.shape
    H = w_hh.shape[0]
    h = jnp.zeros((B, H), jnp.float32)
    for t in range(T):
        h = jnp.tanh(x[:, t, :] @ w_ih.T + b_ih + h @ w_hh.T + b_hh)
    return h @ w_fc.T + b_fc


if __name__ == "__main__":
    # Small shapes consistent with the module's forward.
    B, T, D_in, H, O = 2, 8, 16, 32, 4

    key = jax.random.PRNGKey(0)
    ks = jax.random.split(key, 7)
    scale = 1.0 / np.sqrt(H)   # PyTorch-style uniform(-1/sqrt(H), 1/sqrt(H)) init
    x    = jax.random.normal(ks[0], (B, T, D_in), jnp.float32)
    w_ih = jax.random.uniform(ks[1], (H, D_in), jnp.float32, -scale, scale)
    w_hh = jax.random.uniform(ks[2], (H, H),    jnp.float32, -scale, scale)
    b_ih = jax.random.uniform(ks[3], (H,),      jnp.float32, -scale, scale)
    b_hh = jax.random.uniform(ks[4], (H,),      jnp.float32, -scale, scale)
    w_fc = jax.random.uniform(ks[5], (O, H),    jnp.float32, -scale, scale)
    b_fc = jax.random.uniform(ks[6], (O,),      jnp.float32, -scale, scale)

    ref = _reference(x, w_ih, w_hh, b_ih, b_hh, w_fc, b_fc)

    # f32 MXU path (tight check), 2 even time-chunks: exercises the streamed-T
    # grid and the cross-chunk hidden-state carry in the resident output block.
    out_f32 = simple_rnn_forward(x, w_ih, w_hh, b_ih, b_hh, w_fc, b_fc,
                                 mxu_dtype=jnp.float32, t_chunk=4)
    jax.block_until_ready(out_f32)
    np.testing.assert_allclose(np.asarray(out_f32), np.asarray(ref),
                               rtol=1e-5, atol=1e-5)

    # Default bf16 MXU path with a ragged T (8 % 3 != 0): exercises the masked
    # padded-timestep handling.  Carry / bias / tanh stay f32.
    out_bf16 = simple_rnn_forward(x, w_ih, w_hh, b_ih, b_hh, w_fc, b_fc,
                                  t_chunk=3)
    jax.block_until_ready(out_bf16)
    np.testing.assert_allclose(np.asarray(out_bf16), np.asarray(ref),
                               rtol=5e-2, atol=5e-2)

    # Fully-default path: bf16 + auto t_chunk / vmem_limit_bytes sizing.
    out_def = simple_rnn_forward(x, w_ih, w_hh, b_ih, b_hh, w_fc, b_fc)
    jax.block_until_ready(out_def)
    np.testing.assert_allclose(np.asarray(out_def), np.asarray(ref),
                               rtol=5e-2, atol=5e-2)

    print("KERNEL_OK")
</pallas_src>

<mosaic_0001>
module attributes {stable_mosaic.version = 11 : i64} {
  func.func @_rnn_kernel(%arg0: i32, %arg1: memref<32x16xf32, #tpu.memory_space<vmem>>, %arg2: memref<16x128xf32, #tpu.memory_space<vmem>>, %arg3: memref<128x128xf32, #tpu.memory_space<vmem>>, %arg4: memref<1x128xf32, #tpu.memory_space<vmem>>, %arg5: memref<8x128xf32, #tpu.memory_space<vmem>>, %arg6: memref<32x128xf32, #tpu.memory_space<vmem>>) attributes {dimension_semantics = [#tpu.dimension_semantics<arbitrary>], iteration_bounds = array<i64: 2>, scalar_prefetch = 0 : i64, scratch_operands = 1 : i64, tpu.core_type = #tpu.core_type<tc>, window_params = [{transform_indices = @transform_0, window_bounds = array<i64: 32, 16>}, {pipeline_mode = #tpu.pipeline_mode<synchronous>, transform_indices = @transform_1, window_bounds = array<i64: 16, 128>}, {pipeline_mode = #tpu.pipeline_mode<synchronous>, transform_indices = @transform_2, window_bounds = array<i64: 128, 128>}, {pipeline_mode = #tpu.pipeline_mode<synchronous>, transform_indices = @transform_3, window_bounds = array<i64: 1, 128>}, {pipeline_mode = #tpu.pipeline_mode<synchronous>, transform_indices = @transform_4, window_bounds = array<i64: 8, 128>}]} {
    %c0_i32 = arith.constant 0 : i32
    %0 = arith.cmpi eq, %arg0, %c0_i32 : i32
    %1 = arith.extui %0 : i1 to i32
    %c0_i32_0 = arith.constant 0 : i32
    %2 = arith.cmpi ne, %1, %c0_i32_0 : i32
    scf.if %2 {
      %cst_26 = arith.constant 0.000000e+00 : f32
      %41 = vector.broadcast %cst_26 : f32 to vector<8x128xf32>
      %c0_27 = arith.constant 0 : index
      %c0_28 = arith.constant 0 : index
      %42 = vector.load %arg5[%c0_27, %c0_28] : memref<8x128xf32, #tpu.memory_space<vmem>>, vector<8x128xf32>
      tpu.vector_store %arg5[%c0_27, %c0_28], %41 {strides = array<i32>} : memref<8x128xf32, #tpu.memory_space<vmem>>, vector<8x128xf32>,
    } else {
    }
    %c0 = arith.constant 0 : index
    %c0_1 = arith.constant 0 : index
    %3 = vector.load %arg1[%c0, %c0_1] : memref<32x16xf32, #tpu.memory_space<vmem>>, vector<32x16xf32>
    %c0_2 = arith.constant 0 : index
    %c0_3 = arith.constant 0 : index
    %4 = vector.load %arg2[%c0_2, %c0_3] : memref<16x128xf32, #tpu.memory_space<vmem>>, vector<16x128xf32>
    %cst = arith.constant dense<0.000000e+00> : vector<32x128xf32>
    %5 = tpu.matmul %3, %4, %cst {dimension_numbers = #tpu.dot_dimension_numbers<[1], [0], [0], [1], [0, 0, 1, 1], [], []>} : vector<32x16xf32>, vector<16x128xf32>, vector<32x128xf32> -> vector<32x128xf32>
    %c0_4 = arith.constant 0 : index
    %c0_5 = arith.constant 0 : index
    %6 = vector.load %arg4[%c0_4, %c0_5] : memref<1x128xf32, #tpu.memory_space<vmem>>, vector<1x128xf32>
    %7 = vector.broadcast %6 : vector<1x128xf32> to vector<32x128xf32>
    %8 = arith.addf %5, %7 : vector<32x128xf32>
    %c0_6 = arith.constant 0 : index
    %c0_7 = arith.constant 0 : index
    %9 = vector.load %arg6[%c0_6, %c0_7] : memref<32x128xf32, #tpu.memory_space<vmem>>, vector<32x128xf32>
    tpu.vector_store %arg6[%c0_6, %c0_7], %8 {strides = array<i32>} : memref<32x128xf32, #tpu.memory_space<vmem>>, vector<32x128xf32>,
    %c0_8 = arith.constant 0 : index
    %c0_9 = arith.constant 0 : index
    %10 = vector.load %arg3[%c0_8, %c0_9] : memref<128x128xf32, #tpu.memory_space<vmem>>, vector<128x128xf32>
    %c0_10 = arith.constant 0 : index
    %c0_11 = arith.constant 0 : index
    %11 = vector.load %arg5[%c0_10, %c0_11] : memref<8x128xf32, #tpu.memory_space<vmem>>, vector<8x128xf32>
    %c0_i32_12 = arith.constant 0 : i32
    %c8_i32 = arith.constant 8 : i32
    %12 = arith.muli %c0_i32_12, %c8_i32 : i32
    %13 = tpu.assume_multiple %12, 8 : i32
    %14 = arith.index_cast %13 : i32 to index
    %c0_13 = arith.constant 0 : index
    %15 = vector.load %arg6[%14, %c0_13] : memref<32x128xf32, #tpu.memory_space<vmem>>, vector<8x128xf32>
    %cst_14 = arith.constant dense<0.000000e+00> : vector<8x128xf32>
    %16 = tpu.matmul %11, %10, %cst_14 {dimension_numbers = #tpu.dot_dimension_numbers<[1], [0], [0], [1], [0, 0, 1, 1], [], []>} : vector<8x128xf32>, vector<128x128xf32>, vector<8x128xf32> -> vector<8x128xf32>
    %17 = arith.addf %15, %16 : vector<8x128xf32>
    %18 = math.tanh %17 : vector<8x128xf32>
    %c1_i32 = arith.constant 1 : i32
    %c8_i32_15 = arith.constant 8 : i32
    %19 = arith.muli %c1_i32, %c8_i32_15 : i32
    %20 = tpu.assume_multiple %19, 8 : i32
    %21 = arith.index_cast %20 : i32 to index
    %c0_16 = arith.constant 0 : index
    %22 = vector.load %arg6[%21, %c0_16] : memref<32x128xf32, #tpu.memory_space<vmem>>, vector<8x128xf32>
    %cst_17 = arith.constant dense<0.000000e+00> : vector<8x128xf32>
    %23 = tpu.matmul %18, %10, %cst_17 {dimension_numbers = #tpu.dot_dimension_numbers<[1], [0], [0], [1], [0, 0, 1, 1], [], []>} : vector<8x128xf32>, vector<128x128xf32>, vector<8x128xf32> -> vector<8x128xf32>
    %24 = arith.addf %22, %23 : vector<8x128xf32>
    %25 = math.tanh %24 : vector<8x128xf32>
    %c2_i32 = arith.constant 2 : i32
    %c8_i32_18 = arith.constant 8 : i32
    %26 = arith.muli %c2_i32, %c8_i32_18 : i32
    %27 = tpu.assume_multiple %26, 8 : i32
    %28 = arith.index_cast %27 : i32 to index
    %c0_19 = arith.constant 0 : index
    %29 = vector.load %arg6[%28, %c0_19] : memref<32x128xf32, #tpu.memory_space<vmem>>, vector<8x128xf32>
    %cst_20 = arith.constant dense<0.000000e+00> : vector<8x128xf32>
    %30 = tpu.matmul %25, %10, %cst_20 {dimension_numbers = #tpu.dot_dimension_numbers<[1], [0], [0], [1], [0, 0, 1, 1], [], []>} : vector<8x128xf32>, vector<128x128xf32>, vector<8x128xf32> -> vector<8x128xf32>
    %31 = arith.addf %29, %30 : vector<8x128xf32>
    %32 = math.tanh %31 : vector<8x128xf32>
    %c3_i32 = arith.constant 3 : i32
    %c8_i32_21 = arith.constant 8 : i32
    %33 = arith.muli %c3_i32, %c8_i32_21 : i32
    %34 = tpu.assume_multiple %33, 8 : i32
    %35 = arith.index_cast %34 : i32 to index
    %c0_22 = arith.constant 0 : index
    %36 = vector.load %arg6[%35, %c0_22] : memref<32x128xf32, #tpu.memory_space<vmem>>, vector<8x128xf32>
    %cst_23 = arith.constant dense<0.000000e+00> : vector<8x128xf32>
    %37 = tpu.matmul %32, %10, %cst_23 {dimension_numbers = #tpu.dot_dimension_numbers<[1], [0], [0], [1], [0, 0, 1, 1], [], []>} : vector<8x128xf32>, vector<128x128xf32>, vector<8x128xf32> -> vector<8x128xf32>
    %38 = arith.addf %36, %37 : vector<8x128xf32>
    %39 = math.tanh %38 : vector<8x128xf32>
    %c4_i32 = arith.constant 4 : i32
    %c0_24 = arith.constant 0 : index
    %c0_25 = arith.constant 0 : index
    %40 = vector.load %arg5[%c0_24, %c0_25] : memref<8x128xf32, #tpu.memory_space<vmem>>, vector<8x128xf32>
    tpu.vector_store %arg5[%c0_24, %c0_25], %39 {strides = array<i32>} : memref<8x128xf32, #tpu.memory_space<vmem>>, vector<8x128xf32>,
    return
  }
  func.func @transform_0(%arg0: i32) -> (i32, i32) {
    %c0_i32 = arith.constant 0 : i32
    %c0_i32_0 = arith.constant 0 : i32
    return %arg0, %c0_i32 : i32, i32
  }
  func.func @transform_1(%arg0: i32) -> (i32, i32) {
    %c0_i32 = arith.constant 0 : i32
    %c0_i32_0 = arith.constant 0 : i32
    %c0_i32_1 = arith.constant 0 : i32
    return %c0_i32, %c0_i32_0 : i32, i32
  }
  func.func @transform_2(%arg0: i32) -> (i32, i32) {
    %c0_i32 = arith.constant 0 : i32
    %c0_i32_0 = arith.constant 0 : i32
    %c0_i32_1 = arith.constant 0 : i32
    return %c0_i32, %c0_i32_0 : i32, i32
  }
  func.func @transform_3(%arg0: i32) -> (i32, i32) {
    %c0_i32 = arith.constant 0 : i32
    %c0_i32_0 = arith.constant 0 : i32
    %c0_i32_1 = arith.constant 0 : i32
    return %c0_i32, %c0_i32_0 : i32, i32
  }
  func.func @transform_4(%arg0: i32) -> (i32, i32) {
    %c0_i32 = arith.constant 0 : i32
    %c0_i32_0 = arith.constant 0 : i32
    %c0_i32_1 = arith.constant 0 : i32
    return %c0_i32, %c0_i32_0 : i32, i32
  }
}

</mosaic_0001>

<llo_original>
// kernel: tpu_custom_call.1
$region0: #{tpu_custom_call.1}
  #allocation0 [shape = 'u32[]', space=smem, size = 0x4, offset = 0x4, fixed_abs, tag = 'smem constant byte address 0x4 - core index']
  #allocation1 [shape = 'u32[144,128]{1,0:T(1,128)}', space=vmem, size = 0x12000, scoped, tag = 'internal scratch']
  #allocation2 [shape = 'f32[32,128]{1,0:T(8,128)}', space=vmem, size = 0x4000, scoped, tag = 'scratch operand']
  %s0 = inlined_call_operand.vmem [shape: f32[64,16], index: 0, kind: input, shape index: {}]
  %s1 = inlined_call_operand.vmem [shape: f32[16,128], index: 1, kind: input, shape index: {}]
  %s2 = inlined_call_operand.hbm [shape: f32[128,128], index: 2, kind: input, shape index: {}]
  %s3 = inlined_call_operand.vmem [shape: f32[1,128], index: 3, kind: input, shape index: {}]
  %s4 = inlined_call_operand.hbm [shape: f32[8,128], index: 4, kind: output, shape index: {}]
  %s5 = sld [smem:[#allocation0]]
  $region57: #{tpu_custom_call.1} parent=0
    _
  %s7 = ssub.s32 1, %s5
  %s8 = scalar_select 0, %s7, %s5
  $region1: #{tpu_custom_call.1} parent=0
    #allocation3 [shape = 'u8[65536]{0}', space=vmem, size = 0x10000, scoped, tag = 'input window, operand 2, single buffered']
    #allocation4 [shape = 's32[2]{0}', space=sflag, size = 0x8, scoped, tag = 'scoped memory for tpu_custom_call.1']
    #allocation5 [shape = 's32[2]{0}', space=sflag, size = 0x8, scoped, tag = 'scoped memory for tpu_custom_call.1']
    #allocation6 [shape = 'u8[4096]{0}', space=vmem, size = 0x1000, scoped, tag = 'output window, operand 0, single buffered']
    %9 = vsyncpa [#allocation4], 0
    %10 = vsyncpa [#allocation5], 0
    loop: start=0, step=1, limit=4
    $region2: #{tpu_custom_call.1} parent=1 // loop_pre_header
      _
    $region3: #{tpu_custom_call.1} parent=1 // loop_header
      %s12 = sphi 0, %s16
      %p13 = scmp.ge.s32.totalorder %s12, 4
      %s22 = sphi 0, %s24
      %s25 = sphi 0, %s22
      %s26 = sphi 0, %s25
      %s42 = sphi 0, %s26
      %s46 = sphi 0, %s46
      %s48 = sphi 0, %s46
      %s49 = sphi 0, %s48
      %s63 = sphi 0, %s49
      %s67 = sphi 0, %s67
      %s69 = sphi 0, %s67
      %s70 = sphi 0, %s69
      %s84 = sphi 0, %s70
      %s88 = sphi 0, %s88
      %s90 = sphi 0, %s88
      %s91 = sphi 0, %s90
      %s105 = sphi 0, %s91
      %s109 = sphi 0, %s109
      %s111 = sphi 0, %s109
      %s112 = sphi 0, %s111
      %s126 = sphi 0, %s112
    $region4: #{tpu_custom_call.1} parent=1 // loop_header_branch
      %15 = sbr.rel (%p13) target = $region8
    $region5: #{tpu_custom_call.1} parent=1 // loop_body
      %s17 = ssub.s32 %s12, 1
      %s18 = ssub.s32 %s12, 2
      %s19 = sadd.s32 %s12, 1
      %s20 = ssub.s32 %s12, %s19
      %p21 = scmp.eq.s32.totalorder %s20, 0
      %s23 = sadd.s32 %s22, 1
      %s24 = scalar_select %p21, %s22, %s23
      %p27 = pneg %p21
      %p28 = scmp.eq.s32.totalorder %s12, 1
      %p29 = por %p27, %p28
      %p30 = scmp.ne.s32.totalorder %s22, %s25
      %p31 = scmp.eq.s32.totalorder %s12, 0
      %p32 = por %p30, %p31
      %p33 = scmp.ne.s32.totalorder %s22, %s25
      %p34 = scmp.eq.s32.totalorder %s17, 1
      %p35 = por %p33, %p34
      %p36 = scmp.ne.s32.totalorder %s25, %s26
      %p37 = scmp.eq.s32.totalorder %s17, 0
      %p38 = por %p36, %p37
      %p39 = scmp.ne.s32.totalorder %s25, %s26
      %p40 = scmp.eq.s32.totalorder %s18, 1
      %p41 = por %p39, %p40
      %p43 = scmp.ne.s32.totalorder %s26, %s42
      %p44 = scmp.eq.s32.totalorder %s18, 0
      %p45 = por %p43, %p44
      %s47 = sadd.s32 %s46, 1
      %p50 = scmp.eq.s32.totalorder %s12, 1
      %p51 = scmp.ne.s32.totalorder %s46, %s48
      %p52 = scmp.eq.s32.totalorder %s12, 0
      %p53 = por %p51, %p52
      %p54 = scmp.ne.s32.totalorder %s46, %s48
      %p55 = scmp.eq.s32.totalorder %s17, 1
      %p56 = por %p54, %p55
      %p57 = scmp.ne.s32.totalorder %s48, %s49
      %p58 = scmp.eq.s32.totalorder %s17, 0
      %p59 = por %p57, %p58
      %p60 = scmp.ne.s32.totalorder %s48, %s49
      %p61 = scmp.eq.s32.totalorder %s18, 1
      %p62 = por %p60, %p61
      %p64 = scmp.ne.s32.totalorder %s49, %s63
      %p65 = scmp.eq.s32.totalorder %s18, 0
      %p66 = por %p64, %p65
      %s68 = sadd.s32 %s67, 1
      %p71 = scmp.eq.s32.totalorder %s12, 1
      %p72 = scmp.ne.s32.totalorder %s67, %s69
      %p73 = scmp.eq.s32.totalorder %s12, 0
      %p74 = por %p72, %p73
      %p75 = scmp.ne.s32.totalorder %s67, %s69
      %p76 = scmp.eq.s32.totalorder %s17, 1
      %p77 = por %p75, %p76
      %p78 = scmp.ne.s32.totalorder %s69, %s70
      %p79 = scmp.eq.s32.totalorder %s17, 0
      %p80 = por %p78, %p79
      %p81 = scmp.ne.s32.totalorder %s69, %s70
      %p82 = scmp.eq.s32.totalorder %s18, 1
      %p83 = por %p81, %p82
      %p85 = scmp.ne.s32.totalorder %s70, %s84
      %p86 = scmp.eq.s32.totalorder %s18, 0
      %p87 = por %p85, %p86
      %s89 = sadd.s32 %s88, 1
      %p92 = scmp.eq.s32.totalorder %s12, 1
      %p93 = scmp.ne.s32.totalorder %s88, %s90
      %p94 = scmp.eq.s32.totalorder %s12, 0
      %p95 = por %p93, %p94
      %p96 = scmp.ne.s32.totalorder %s88, %s90
      %p97 = scmp.eq.s32.totalorder %s17, 1
      %p98 = por %p96, %p97
      %p99 = scmp.ne.s32.totalorder %s90, %s91
      %p100 = scmp.eq.s32.totalorder %s17, 0
      %p101 = por %p99, %p100
      %p102 = scmp.ne.s32.totalorder %s90, %s91
      %p103 = scmp.eq.s32.totalorder %s18, 1
      %p104 = por %p102, %p103
      %p106 = scmp.ne.s32.totalorder %s91, %s105
      %p107 = scmp.eq.s32.totalorder %s18, 0
      %p108 = por %p106, %p107
      %s110 = sadd.s32 %s109, 1
      %p113 = scmp.eq.s32.totalorder %s12, 1
      %p114 = scmp.ne.s32.totalorder %s109, %s111
      %p115 = scmp.eq.s32.totalorder %s12, 0
      %p116 = por %p114, %p115
      %p117 = scmp.ne.s32.totalorder %s109, %s111
      %p118 = scmp.eq.s32.totalorder %s17, 1
      %p119 = por %p117, %p118
      %p120 = scmp.ne.s32.totalorder %s111, %s112
      %p121 = scmp.eq.s32.totalorder %s17, 0
      %p122 = por %p120, %p121
      %p123 = scmp.ne.s32.totalorder %s111, %s112
      %p124 = scmp.eq.s32.totalorder %s18, 1
      %p125 = por %p123, %p124
      %p127 = scmp.ne.s32.totalorder %s112, %s126
      %p128 = scmp.eq.s32.totalorder %s18, 0
      %p129 = por %p127, %p128
      %p130 = scmp.le.s32.totalorder 1, %s12
      %p131 = scmp.lt.s32.totalorder %s12, 3
      %p132 = pnand %p130, %p131
      %p133 = pneg %p132
      // Predicated region
      $region9: #{tpu_custom_call.1} parent=5 // pred_check
        _
      $region10: #{tpu_custom_call.1} parent=5 // pred_check_branch
        %135 = sbr.rel (%p132) target = $region12
      $region11: #{tpu_custom_call.1} parent=5 // pred_region
        %s136 = ssub.s32 %s12, 1
        // Predicated region
        $region13: #{tpu_custom_call.1} parent=11 // pred_check
          %p137 = pneg %p59
        $region14: #{tpu_custom_call.1} parent=11 // pred_check_branch
          %139 = sbr.rel (%p137) target = $region16
        $region15: #{tpu_custom_call.1} parent=11 // pred_region
          _
        $region16: #{tpu_custom_call.1} parent=11 // pred_fallthru
          _
        // Predicated region
        $region17: #{tpu_custom_call.1} parent=11 // pred_check
          %p140 = pneg %p80
        $region18: #{tpu_custom_call.1} parent=11 // pred_check_branch
          %142 = sbr.rel (%p140) target = $region20
        $region19: #{tpu_custom_call.1} parent=11 // pred_region
          %s144 = ssub.s32 2048, 2048
          %145 = vsyncadd [#allocation4], %s144
          %s146 = sshll.u32 [#allocation3], 4
          %s147 = int_to_ptr.vmem [resolvable:$true] %s146
          %152 = dma.hbm_to_vmem [thread:$0]  %s2, 2048, %s147, [#allocation4], 128, 128, 8
        $region20: #{tpu_custom_call.1} parent=11 // pred_fallthru
          _
        // Predicated region
        $region21: #{tpu_custom_call.1} parent=11 // pred_check
          %p153 = pneg %p101
        $region22: #{tpu_custom_call.1} parent=11 // pred_check_branch
          %155 = sbr.rel (%p153) target = $region24
        $region23: #{tpu_custom_call.1} parent=11 // pred_region
          _
        $region24: #{tpu_custom_call.1} parent=11 // pred_fallthru
          _
      $region12: #{tpu_custom_call.1} parent=5 // pred_fallthru
        _
      %p156 = scmp.lt.s32.totalorder %s12, 2
      // Predicated region
      $region25: #{tpu_custom_call.1} parent=5 // pred_check
        %p157 = pneg %p156
      $region26: #{tpu_custom_call.1} parent=5 // pred_check_branch
        %159 = sbr.rel (%p157) target = $region28
      $region27: #{tpu_custom_call.1} parent=5 // pred_region
        // Predicated region
        $region29: #{tpu_custom_call.1} parent=27 // pred_check
          %p160 = pneg %p32
        $region30: #{tpu_custom_call.1} parent=27 // pred_check_branch
          %162 = sbr.rel (%p160) target = $region32
        $region31: #{tpu_custom_call.1} parent=27 // pred_region
          %s163 = smul.u32 4, %s12
          %p164 = scmp.lt.s32.totalorder %s163, 7
          %s165 = scalar_select %p164, %s163, 7
          %s166 = smul.addr %s165, 8
          %s167 = scalar_lea.vmem %s0, %s166
          %s168 = smul.u32 4, %s12
        $region32: #{tpu_custom_call.1} parent=27 // pred_fallthru
          _
      $region28: #{tpu_custom_call.1} parent=5 // pred_fallthru
        _
      %p169 = scmp.le.s32.totalorder 1, %s12
      %p170 = scmp.lt.s32.totalorder %s12, 3
      %p171 = pnand %p169, %p170
      %p172 = pneg %p171
      // Predicated region
      $region33: #{tpu_custom_call.1} parent=5 // pred_check
        _
      $region34: #{tpu_custom_call.1} parent=5 // pred_check_branch
        %174 = sbr.rel (%p171) target = $region36
      $region35: #{tpu_custom_call.1} parent=5 // pred_region
        %s175 = ssub.s32 %s12, 1
        // Predicated region
        $region37: #{tpu_custom_call.1} parent=35 // pred_check
          %p176 = pneg %p80
        $region38: #{tpu_custom_call.1} parent=35 // pred_check_branch
          %178 = sbr.rel (%p176) target = $region40
        $region39: #{tpu_custom_call.1} parent=35 // pred_region
          %179 = dma.done [#allocation4], 2048
        $region40: #{tpu_custom_call.1} parent=35 // pred_fallthru
          _
        %s180 = smul.u32 4, %s17
        %p181 = scmp.lt.s32.totalorder %s180, 7
        %s182 = scalar_select %p181, %s180, 7
        %s183 = smul.addr %s182, 8
        %s184 = scalar_lea.vmem %s0, %s183
        %p185 = pneg %p38
        %p186 = pneg %p35
        %p187 = pneg %p59
        %p188 = pneg %p56
        %p189 = pneg %p80
        %p190 = pneg %p77
        %p191 = pneg %p101
        %p192 = pneg %p98
        %p193 = pneg %p122
        %p194 = pneg %p119
        %s195 = smul.u32 4, %s17
        %p196 = scmp.lt.s32.totalorder %s195, 7
        %s197 = scalar_select %p196, %s195, 7
        %s198 = smul.addr %s197, 8
        %s199 = scalar_lea.vmem %s0, %s198
        %s200 = smul.u32 4, %s17
        %p201 = scmp.eq.s32.totalorder %s17, 0
        // Predicated region
        $region41: #{tpu_custom_call.1} parent=35 // pred_check
          %p202 = pneg %p201
        $region42: #{tpu_custom_call.1} parent=35 // pred_check_branch
          %204 = sbr.rel (%p202) target = $region44
        $region43: #{tpu_custom_call.1} parent=35 // pred_region
          %205 = vst [vmem:[#allocation6] sm:$0xff] 0.0
        $region44: #{tpu_custom_call.1} parent=35 // pred_fallthru
          _
        %v206 = vld [vmem:[%s199] sm:$0xff]
        %v207 = vld [vmem:[%s199 + $0x8] sm:$0xff]
        %v208 = vld [vmem:[%s199 + $0x10] sm:$0xff]
        %v209 = vld [vmem:[%s199 + $0x18] sm:$0xff]
        %v210 = vld [vmem:[%s1] sm:$0xff]
        %v211 = vld [vmem:[%s1 + $0x8] sm:$0xff]
        %v212 = vld [vmem:[%s3] sm:$0x1]
        %v214 = vlaneseq
        %v215 = vshrl.u32 %v214, 7
        %v216 = vsub.s32 0, %v215
        %v217 = vrot.slane %v212, %v216
        %vm219 = vcmask 130048
        %v221 = vsel %vm219, %v206, 0
        %v224 = vsel %vm219, %v207, 0
        %v227 = vsel %vm219, %v208, 0
        %v230 = vsel %vm219, %v209, 0
        %232 = vmatprep.subr.mxu0 0.0
        %233 = vmatpush1.msra.mxu0 %v210
        %234 = vmatprep.subr.mxu0 0.0
        %235 = vmatpush1.msra.mxu0 %v211
        %236 = vmatprep.subr.mxu0 0.0
        %237 = vmatpush1.msra.mxu0 0.0
        %238 = vmatprep.subr.mxu0 0.0
        %239 = vmatpush1.msra.mxu0 0.0
        %240 = vmatprep.subr.mxu0 0.0
        %241 = vmatpush1.msra.mxu0 0.0
        %242 = vmatprep.subr.mxu0 0.0
        %243 = vmatpush1.msra.mxu0 0.0
        %244 = vmatprep.subr.mxu0 0.0
        %245 = vmatpush1.msra.mxu0 0.0
        %246 = vmatprep.subr.mxu0 0.0
        %247 = vmatpush1.msra.mxu0 0.0
        %248 = vmatprep.subr.mxu0 0.0
        %249 = vmatpush1.msra.mxu0 0.0
        %250 = vmatprep.subr.mxu0 0.0
        %251 = vmatpush1.msra.mxu0 0.0
        %252 = vmatprep.subr.mxu0 0.0
        %253 = vmatpush1.msra.mxu0 0.0
        %254 = vmatprep.subr.mxu0 0.0
        %255 = vmatpush1.msra.mxu0 0.0
        %256 = vmatprep.subr.mxu0 0.0
        %257 = vmatpush1.msra.mxu0 0.0
        %258 = vmatprep.subr.mxu0 0.0
        %259 = vmatpush1.msra.mxu0 0.0
        %260 = vmatprep.subr.mxu0 0.0
        %261 = vmatpush1.msra.mxu0 0.0
        %262 = vmatprep.subr.mxu0 0.0
        %263 = vmatpush1.msra.mxu0 0.0
        %264 = vmatprep.subr.mxu0 0.0
        %265 = vmatpush1.msra.mxu0 0.0
        %266 = vmatprep.subr.mxu0 0.0
        %267 = vmatpush1.msra.mxu0 0.0
        %268 = vmatprep.subr.mxu0 0.0
        %269 = vmatpush1.msra.mxu0 0.0
        %270 = vmatprep.subr.mxu0 0.0
        %271 = vmatpush1.msra.mxu0 0.0
        %272 = vmatprep.subr.mxu0 0.0
        %273 = vmatpush1.msra.mxu0 0.0
        %274 = vmatprep.subr.mxu0 0.0
        %275 = vmatpush1.msra.mxu0 0.0
        %276 = vmatprep.subr.mxu0 0.0
        %277 = vmatpush1.msra.mxu0 0.0
        %278 = vmatprep.subr.mxu0 0.0
        %279 = vmatpush1.msra.mxu0 0.0
        %280 = vmatprep.subr.mxu0 0.0
        %281 = vmatpush1.msra.mxu0 0.0
        %282 = vmatprep.subr.mxu0 0.0
        %283 = vmatpush1.msra.mxu0 0.0
        %284 = vmatprep.subr.mxu0 0.0
        %285 = vmatpush1.msra.mxu0 0.0
        %286 = vmatprep.subr.mxu0 0.0
        %287 = vmatpush1.msra.mxu0 0.0
        %288 = vmatprep.subr.mxu0 0.0
        %289 = vmatpush1.msra.mxu0 0.0
        %290 = vmatprep.subr.mxu0 0.0
        %291 = vmatpush1.msra.mxu0 0.0
        %292 = vmatprep.subr.mxu0 0.0
        %293 = vmatpush1.msra.mxu0 0.0
        %294 = vmatprep.subr.mxu0 0.0
        %295 = vmatpush1.msra.mxu0 0.0
        %296 = vmatprep.mubr.f32.mxu0 0.0
        %297 = vmatmul.mubr.f32.gmra.mrb[0].mxu0 %v221
        %v298 = vpop.f32.mrb[0].mxu0
        %v299 = vadd.f32 %v217, %v298
        %v300 = vpop.f32.mrb[0].mxu0
        %301 = vmatprep.mubr.f32.mxu0 0.0
        %302 = vmatmul.mubr.f32.gmra.mrb[0].mxu0 %v224
        %v303 = vpop.f32.mrb[0].mxu0
        %v304 = vadd.f32 %v217, %v303
        %v305 = vpop.f32.mrb[0].mxu0
        %306 = vmatprep.mubr.f32.mxu0 0.0
        %307 = vmatmul.mubr.f32.gmra.mrb[0].mxu0 %v227
        %v308 = vpop.f32.mrb[0].mxu0
        %v309 = vadd.f32 %v217, %v308
        %v310 = vpop.f32.mrb[0].mxu0
        %311 = vmatprep.mubr.f32.mxu0 0.0
        %312 = vmatmul.mubr.f32.gmra.mrb[0].mxu0 %v230
        %v313 = vpop.f32.mrb[0].mxu0
        %v314 = vadd.f32 %v217, %v313
        %v315 = vpop.f32.mrb[0].mxu0
        %316 = vdwg.mxu0
        %317 = vst [vmem:[#allocation2] sm:$0xff] %v299
        %318 = vst [vmem:[#allocation2 + $0x8] sm:$0xff] %v304
        %319 = vst [vmem:[#allocation2 + $0x10] sm:$0xff] %v309
        %320 = vst [vmem:[#allocation2 + $0x18] sm:$0xff] %v314
        %v321 = vld [vmem:[#allocation3] sm:$0xff]
        %v322 = vld [vmem:[#allocation3 + $0x8] sm:$0xff]
        %v323 = vld [vmem:[#allocation3 + $0x10] sm:$0xff]
        %v324 = vld [vmem:[#allocation3 + $0x18] sm:$0xff]
        %v325 = vld [vmem:[#allocation3 + $0x20] sm:$0xff]
        %v326 = vld [vmem:[#allocation3 + $0x28] sm:$0xff]
        %v327 = vld [vmem:[#allocation3 + $0x30] sm:$0xff]
        %v328 = vld [vmem:[#allocation3 + $0x38] sm:$0xff]
        %v329 = vld [vmem:[#allocation3 + $0x40] sm:$0xff]
        %v330 = vld [vmem:[#allocation3 + $0x48] sm:$0xff]
        %v331 = vld [vmem:[#allocation3 + $0x50] sm:$0xff]
        %v332 = vld [vmem:[#allocation3 + $0x58] sm:$0xff]
        %v333 = vld [vmem:[#allocation3 + $0x60] sm:$0xff]
        %v334 = vld [vmem:[#allocation3 + $0x68] sm:$0xff]
        %v335 = vld [vmem:[#allocation3 + $0x70] sm:$0xff]
        %v336 = vld [vmem:[#allocation3 + $0x78] sm:$0xff]
        %v337 = vld [vmem:[#allocation6] sm:$0xff]
        %v338 = vld [vmem:[#allocation2] sm:$0xff]
        %339 = vmatprep.subr.mxu0 0.0
        %340 = vmatpush1.msra.mxu0 %v321
        %341 = vmatprep.subr.mxu0 0.0
        %342 = vmatpush1.msra.mxu0 %v322
        %343 = vmatprep.subr.mxu0 0.0
        %344 = vmatpush1.msra.mxu0 %v323
        %345 = vmatprep.subr.mxu0 0.0
        %346 = vmatpush1.msra.mxu0 %v324
        %347 = vmatprep.subr.mxu0 0.0
        %348 = vmatpush1.msra.mxu0 %v325
        %349 = vmatprep.subr.mxu0 0.0
        %350 = vmatpush1.msra.mxu0 %v326
        %351 = vmatprep.subr.mxu0 0.0
        %352 = vmatpush1.msra.mxu0 %v327
        %353 = vmatprep.subr.mxu0 0.0
        %354 = vmatpush1.msra.mxu0 %v328
        %355 = vmatprep.subr.mxu0 0.0
        %356 = vmatpush1.msra.mxu0 %v329
        %357 = vmatprep.subr.mxu0 0.0
        %358 = vmatpush1.msra.mxu0 %v330
        %359 = vmatprep.subr.mxu0 0.0
        %360 = vmatpush1.msra.mxu0 %v331
        %361 = vmatprep.subr.mxu0 0.0
        %362 = vmatpush1.msra.mxu0 %v332
        %363 = vmatprep.subr.mxu0 0.0
        %364 = vmatpush1.msra.mxu0 %v333
        %365 = vmatprep.subr.mxu0 0.0
        %366 = vmatpush1.msra.mxu0 %v334
        %367 = vmatprep.subr.mxu0 0.0
        %368 = vmatpush1.msra.mxu0 %v335
        %369 = vmatprep.subr.mxu0 0.0
        %370 = vmatpush1.msra.mxu0 %v336
        %371 = vmatprep.subr.mxu0 0.0
        %372 = vmatpush1.msra.mxu0 0.0
        %373 = vmatprep.subr.mxu0 0.0
        %374 = vmatpush1.msra.mxu0 0.0
        %375 = vmatprep.subr.mxu0 0.0
        %376 = vmatpush1.msra.mxu0 0.0
        %377 = vmatprep.subr.mxu0 0.0
        %378 = vmatpush1.msra.mxu0 0.0
        %379 = vmatprep.subr.mxu0 0.0
        %380 = vmatpush1.msra.mxu0 0.0
        %381 = vmatprep.subr.mxu0 0.0
        %382 = vmatpush1.msra.mxu0 0.0
        %383 = vmatprep.subr.mxu0 0.0
        %384 = vmatpush1.msra.mxu0 0.0
        %385 = vmatprep.subr.mxu0 0.0
        %386 = vmatpush1.msra.mxu0 0.0
        %387 = vmatprep.subr.mxu0 0.0
        %388 = vmatpush1.msra.mxu0 0.0
        %389 = vmatprep.subr.mxu0 0.0
        %390 = vmatpush1.msra.mxu0 0.0
        %391 = vmatprep.subr.mxu0 0.0
        %392 = vmatpush1.msra.mxu0 0.0
        %393 = vmatprep.subr.mxu0 0.0
        %394 = vmatpush1.msra.mxu0 0.0
        %395 = vmatprep.subr.mxu0 0.0
        %396 = vmatpush1.msra.mxu0 0.0
        %397 = vmatprep.subr.mxu0 0.0
        %398 = vmatpush1.msra.mxu0 0.0
        %399 = vmatprep.subr.mxu0 0.0
        %400 = vmatpush1.msra.mxu0 0.0
        %401 = vmatprep.subr.mxu0 0.0
        %402 = vmatpush1.msra.mxu0 0.0
        %403 = vmatprep.mubr.f32.mxu0 0.0
        %404 = vmatmul.mubr.f32.gmra.mrb[0].mxu0 %v337
        %v405 = vpop.f32.mrb[0].mxu0
        %v406 = vadd.f32 0.0, %v405
        %v407 = vpop.f32.mrb[0].mxu0
        %408 = vdwg.mxu0
        %v409 = vadd.f32 %v338, %v406
        %v410 = vtanh.pop %v409
        %s411 = scalar_lea.vmem [#allocation2], 8
        %v412 = vld [vmem:[%s411] sm:$0xff]
        %413 = vmatprep.subr.mxu0 0.0
        %414 = vmatpush1.msra.mxu0 %v321
        %415 = vmatprep.subr.mxu0 0.0
        %416 = vmatpush1.msra.mxu0 %v322
        %417 = vmatprep.subr.mxu0 0.0
        %418 = vmatpush1.msra.mxu0 %v323
        %419 = vmatprep.subr.mxu0 0.0
        %420 = vmatpush1.msra.mxu0 %v324
        %421 = vmatprep.subr.mxu0 0.0
        %422 = vmatpush1.msra.mxu0 %v325
        %423 = vmatprep.subr.mxu0 0.0
        %424 = vmatpush1.msra.mxu0 %v326
        %425 = vmatprep.subr.mxu0 0.0
        %426 = vmatpush1.msra.mxu0 %v327
        %427 = vmatprep.subr.mxu0 0.0
        %428 = vmatpush1.msra.mxu0 %v328
        %429 = vmatprep.subr.mxu0 0.0
        %430 = vmatpush1.msra.mxu0 %v329
        %431 = vmatprep.subr.mxu0 0.0
        %432 = vmatpush1.msra.mxu0 %v330
        %433 = vmatprep.subr.mxu0 0.0
        %434 = vmatpush1.msra.mxu0 %v331
        %435 = vmatprep.subr.mxu0 0.0
        %436 = vmatpush1.msra.mxu0 %v332
        %437 = vmatprep.subr.mxu0 0.0
        %438 = vmatpush1.msra.mxu0 %v333
        %439 = vmatprep.subr.mxu0 0.0
        %440 = vmatpush1.msra.mxu0 %v334
        %441 = vmatprep.subr.mxu0 0.0
        %442 = vmatpush1.msra.mxu0 %v335
        %443 = vmatprep.subr.mxu0 0.0
        %444 = vmatpush1.msra.mxu0 %v336
        %445 = vmatprep.subr.mxu0 0.0
        %446 = vmatpush1.msra.mxu0 0.0
        %447 = vmatprep.subr.mxu0 0.0
        %448 = vmatpush1.msra.mxu0 0.0
        %449 = vmatprep.subr.mxu0 0.0
        %450 = vmatpush1.msra.mxu0 0.0
        %451 = vmatprep.subr.mxu0 0.0
        %452 = vmatpush1.msra.mxu0 0.0
        %453 = vmatprep.subr.mxu0 0.0
        %454 = vmatpush1.msra.mxu0 0.0
        %455 = vmatprep.subr.mxu0 0.0
        %456 = vmatpush1.msra.mxu0 0.0
        %457 = vmatprep.subr.mxu0 0.0
        %458 = vmatpush1.msra.mxu0 0.0
        %459 = vmatprep.subr.mxu0 0.0
        %460 = vmatpush1.msra.mxu0 0.0
        %461 = vmatprep.subr.mxu0 0.0
        %462 = vmatpush1.msra.mxu0 0.0
        %463 = vmatprep.subr.mxu0 0.0
        %464 = vmatpush1.msra.mxu0 0.0
        %465 = vmatprep.subr.mxu0 0.0
        %466 = vmatpush1.msra.mxu0 0.0
        %467 = vmatprep.subr.mxu0 0.0
        %468 = vmatpush1.msra.mxu0 0.0
        %469 = vmatprep.subr.mxu0 0.0
        %470 = vmatpush1.msra.mxu0 0.0
        %471 = vmatprep.subr.mxu0 0.0
        %472 = vmatpush1.msra.mxu0 0.0
        %473 = vmatprep.subr.mxu0 0.0
        %474 = vmatpush1.msra.mxu0 0.0
        %475 = vmatprep.subr.mxu0 0.0
        %476 = vmatpush1.msra.mxu0 0.0
        %477 = vmatprep.mubr.f32.mxu0 0.0
        %478 = vmatmul.mubr.f32.gmra.mrb[0].mxu0 %v410
        %v479 = vpop.f32.mrb[0].mxu0
        %v480 = vadd.f32 0.0, %v479
        %v481 = vpop.f32.mrb[0].mxu0
        %482 = vdwg.mxu0
        %v483 = vadd.f32 %v412, %v480
        %v484 = vtanh.pop %v483
        %s485 = scalar_lea.vmem [#allocation2], 16
        %v486 = vld [vmem:[%s485] sm:$0xff]
        %487 = vmatprep.subr.mxu0 0.0
        %488 = vmatpush1.msra.mxu0 %v321
        %489 = vmatprep.subr.mxu0 0.0
        %490 = vmatpush1.msra.mxu0 %v322
        %491 = vmatprep.subr.mxu0 0.0
        %492 = vmatpush1.msra.mxu0 %v323
        %493 = vmatprep.subr.mxu0 0.0
        %494 = vmatpush1.msra.mxu0 %v324
        %495 = vmatprep.subr.mxu0 0.0
        %496 = vmatpush1.msra.mxu0 %v325
        %497 = vmatprep.subr.mxu0 0.0
        %498 = vmatpush1.msra.mxu0 %v326
        %499 = vmatprep.subr.mxu0 0.0
        %500 = vmatpush1.msra.mxu0 %v327
        %501 = vmatprep.subr.mxu0 0.0
        %502 = vmatpush1.msra.mxu0 %v328
        %503 = vmatprep.subr.mxu0 0.0
        %504 = vmatpush1.msra.mxu0 %v329
        %505 = vmatprep.subr.mxu0 0.0
        %506 = vmatpush1.msra.mxu0 %v330
        %507 = vmatprep.subr.mxu0 0.0
        %508 = vmatpush1.msra.mxu0 %v331
        %509 = vmatprep.subr.mxu0 0.0
        %510 = vmatpush1.msra.mxu0 %v332
        %511 = vmatprep.subr.mxu0 0.0
        %512 = vmatpush1.msra.mxu0 %v333
        %513 = vmatprep.subr.mxu0 0.0
        %514 = vmatpush1.msra.mxu0 %v334
        %515 = vmatprep.subr.mxu0 0.0
        %516 = vmatpush1.msra.mxu0 %v335
        %517 = vmatprep.subr.mxu0 0.0
        %518 = vmatpush1.msra.mxu0 %v336
        %519 = vmatprep.subr.mxu0 0.0
        %520 = vmatpush1.msra.mxu0 0.0
        %521 = vmatprep.subr.mxu0 0.0
        %522 = vmatpush1.msra.mxu0 0.0
        %523 = vmatprep.subr.mxu0 0.0
        %524 = vmatpush1.msra.mxu0 0.0
        %525 = vmatprep.subr.mxu0 0.0
        %526 = vmatpush1.msra.mxu0 0.0
        %527 = vmatprep.subr.mxu0 0.0
        %528 = vmatpush1.msra.mxu0 0.0
        %529 = vmatprep.subr.mxu0 0.0
        %530 = vmatpush1.msra.mxu0 0.0
        %531 = vmatprep.subr.mxu0 0.0
        %532 = vmatpush1.msra.mxu0 0.0
        %533 = vmatprep.subr.mxu0 0.0
        %534 = vmatpush1.msra.mxu0 0.0
        %535 = vmatprep.subr.mxu0 0.0
        %536 = vmatpush1.msra.mxu0 0.0
        %537 = vmatprep.subr.mxu0 0.0
        %538 = vmatpush1.msra.mxu0 0.0
        %539 = vmatprep.subr.mxu0 0.0
        %540 = vmatpush1.msra.mxu0 0.0
        %541 = vmatprep.subr.mxu0 0.0
        %542 = vmatpush1.msra.mxu0 0.0
        %543 = vmatprep.subr.mxu0 0.0
        %544 = vmatpush1.msra.mxu0 0.0
        %545 = vmatprep.subr.mxu0 0.0
        %546 = vmatpush1.msra.mxu0 0.0
        %547 = vmatprep.subr.mxu0 0.0
        %548 = vmatpush1.msra.mxu0 0.0
        %549 = vmatprep.subr.mxu0 0.0
        %550 = vmatpush1.msra.mxu0 0.0
        %551 = vmatprep.mubr.f32.mxu0 0.0
        %552 = vmatmul.mubr.f32.gmra.mrb[0].mxu0 %v484
        %v553 = vpop.f32.mrb[0].mxu0
        %v554 = vadd.f32 0.0, %v553
        %v555 = vpop.f32.mrb[0].mxu0
        %556 = vdwg.mxu0
        %v557 = vadd.f32 %v486, %v554
        %v558 = vtanh.pop %v557
        %s559 = scalar_lea.vmem [#allocation2], 24
        %v560 = vld [vmem:[%s559] sm:$0xff]
        %561 = vmatprep.subr.mxu0 0.0
        %562 = vmatpush1.msra.mxu0 %v321
        %563 = vmatprep.subr.mxu0 0.0
        %564 = vmatpush1.msra.mxu0 %v322
        %565 = vmatprep.subr.mxu0 0.0
        %566 = vmatpush1.msra.mxu0 %v323
        %567 = vmatprep.subr.mxu0 0.0
        %568 = vmatpush1.msra.mxu0 %v324
        %569 = vmatprep.subr.mxu0 0.0
        %570 = vmatpush1.msra.mxu0 %v325
        %571 = vmatprep.subr.mxu0 0.0
        %572 = vmatpush1.msra.mxu0 %v326
        %573 = vmatprep.subr.mxu0 0.0
        %574 = vmatpush1.msra.mxu0 %v327
        %575 = vmatprep.subr.mxu0 0.0
        %576 = vmatpush1.msra.mxu0 %v328
        %577 = vmatprep.subr.mxu0 0.0
        %578 = vmatpush1.msra.mxu0 %v329
        %579 = vmatprep.subr.mxu0 0.0
        %580 = vmatpush1.msra.mxu0 %v330
        %581 = vmatprep.subr.mxu0 0.0
        %582 = vmatpush1.msra.mxu0 %v331
        %583 = vmatprep.subr.mxu0 0.0
        %584 = vmatpush1.msra.mxu0 %v332
        %585 = vmatprep.subr.mxu0 0.0
        %586 = vmatpush1.msra.mxu0 %v333
        %587 = vmatprep.subr.mxu0 0.0
        %588 = vmatpush1.msra.mxu0 %v334
        %589 = vmatprep.subr.mxu0 0.0
        %590 = vmatpush1.msra.mxu0 %v335
        %591 = vmatprep.subr.mxu0 0.0
        %592 = vmatpush1.msra.mxu0 %v336
        %593 = vmatprep.subr.mxu0 0.0
        %594 = vmatpush1.msra.mxu0 0.0
        %595 = vmatprep.subr.mxu0 0.0
        %596 = vmatpush1.msra.mxu0 0.0
        %597 = vmatprep.subr.mxu0 0.0
        %598 = vmatpush1.msra.mxu0 0.0
        %599 = vmatprep.subr.mxu0 0.0
        %600 = vmatpush1.msra.mxu0 0.0
        %601 = vmatprep.subr.mxu0 0.0
        %602 = vmatpush1.msra.mxu0 0.0
        %603 = vmatprep.subr.mxu0 0.0
        %604 = vmatpush1.msra.mxu0 0.0
        %605 = vmatprep.subr.mxu0 0.0
        %606 = vmatpush1.msra.mxu0 0.0
        %607 = vmatprep.subr.mxu0 0.0
        %608 = vmatpush1.msra.mxu0 0.0
        %609 = vmatprep.subr.mxu0 0.0
        %610 = vmatpush1.msra.mxu0 0.0
        %611 = vmatprep.subr.mxu0 0.0
        %612 = vmatpush1.msra.mxu0 0.0
        %613 = vmatprep.subr.mxu0 0.0
        %614 = vmatpush1.msra.mxu0 0.0
        %615 = vmatprep.subr.mxu0 0.0
        %616 = vmatpush1.msra.mxu0 0.0
        %617 = vmatprep.subr.mxu0 0.0
        %618 = vmatpush1.msra.mxu0 0.0
        %619 = vmatprep.subr.mxu0 0.0
        %620 = vmatpush1.msra.mxu0 0.0
        %621 = vmatprep.subr.mxu0 0.0
        %622 = vmatpush1.msra.mxu0 0.0
        %623 = vmatprep.subr.mxu0 0.0
        %624 = vmatpush1.msra.mxu0 0.0
        %625 = vmatprep.mubr.f32.mxu0 0.0
        %626 = vmatmul.mubr.f32.gmra.mrb[0].mxu0 %v558
        %v627 = vpop.f32.mrb[0].mxu0
        %v628 = vadd.f32 0.0, %v627
        %v629 = vpop.f32.mrb[0].mxu0
        %630 = vdwg.mxu0
        %v631 = vadd.f32 %v560, %v628
        %v632 = vtanh.pop %v631
        %633 = vst [vmem:[#allocation6] sm:$0xff] %v632
        // Predicated region
        $region45: #{tpu_custom_call.1} parent=35 // pred_check
          %p634 = pneg %p119
        $region46: #{tpu_custom_call.1} parent=35 // pred_check_branch
          %636 = sbr.rel (%p634) target = $region48
        $region47: #{tpu_custom_call.1} parent=35 // pred_region
          %s638 = ssub.s32 128, 128
          %639 = vsyncadd [#allocation5], %s638
          %s641 = sshll.u32 [#allocation6], 4
          %s642 = int_to_ptr.vmem [resolvable:$true] %s641
          %644 = dma.vmem_to_hbm [thread:$0]  %s642, 128, %s4, [#allocation5]
        $region48: #{tpu_custom_call.1} parent=35 // pred_fallthru
          _
        // Predicated region
        $region49: #{tpu_custom_call.1} parent=35 // pred_check
          %p645 = pneg %p119
        $region50: #{tpu_custom_call.1} parent=35 // pred_check_branch
          %647 = sbr.rel (%p645) target = $region52
        $region51: #{tpu_custom_call.1} parent=35 // pred_region
          %648 = dma.done [#allocation5], 128
        $region52: #{tpu_custom_call.1} parent=35 // pred_fallthru
          _
      $region36: #{tpu_custom_call.1} parent=5 // pred_fallthru
        _
      %p649 = scmp.le.s32.totalorder 2, %s12
      // Predicated region
      $region53: #{tpu_custom_call.1} parent=5 // pred_check
        %p650 = pneg %p649
      $region54: #{tpu_custom_call.1} parent=5 // pred_check_branch
        %652 = sbr.rel (%p650) target = $region56
      $region55: #{tpu_custom_call.1} parent=5 // pred_region
        %s653 = ssub.s32 %s12, 2
      $region56: #{tpu_custom_call.1} parent=5 // pred_fallthru
        _
    $region6: #{tpu_custom_call.1} parent=1 // loop_footer
      %s16 = sadd.s32 1, %s12
    $region7: #{tpu_custom_call.1} parent=1 // loop_footer_branch
      %11 = sbr.rel target = $region3
    $region8: #{tpu_custom_call.1} parent=1 // loop_exit
      _
    %654 = vsyncpa [#allocation4], 1
    %s655 = scalar_lea.sflag [#allocation4], 1
    %656 = vsyncpa %s655, 1
    %657 = vsyncpa [#allocation5], 1
    %s658 = scalar_lea.sflag [#allocation5], 1
    %659 = vsyncpa %s658, 1

</llo_original>
